<compile_context>
chip_gen: v6e
topology: v6e:2x2x1
jax: 0.10.0
libtpu: 0.0.40
codegen_flags: <defaults>
</compile_context>

<pallas_src>
import jax
import jax.numpy as jnp
from jax.experimental import pallas as pl
from jax.experimental.pallas import tpu as pltpu


def _aff_kernel(x_ref, y_ref, w1x_ref, w1y_ref, b1_ref, w2_ref, b2_ref, o_ref):
    # x_ref, y_ref, o_ref: (1, C, T)  -- spatial tile T on the lane axis.
    # w1x, w1y: (Ci, C)   b1: (Ci, 1)
    # w2:       (C, Ci)   b2: (C, 1)
    x = x_ref[0].astype(jnp.float32)               # (C, T)
    y = y_ref[0].astype(jnp.float32)               # (C, T)

    # conv1 (1x1) on cat([x, y], channel) == W1x @ x + W1y @ y ; BN1 folded in.
    h = (jnp.dot(w1x_ref[...], x, preferred_element_type=jnp.float32)
         + jnp.dot(w1y_ref[...], y, preferred_element_type=jnp.float32)
         + b1_ref[...])                            # (Ci, T)

    # SiLU, exact tanh form:  h * sigmoid(h) == 0.5 * h * (1 + tanh(h/2)).
    # (one EUP push, no exp(-h) overflow, no approximate reciprocal)
    h = 0.5 * h * (1.0 + jnp.tanh(0.5 * h))

    # conv2 (1x1) with BN2 folded in.
    z = jnp.dot(w2_ref[...], h, preferred_element_type=jnp.float32) + b2_ref[...]
    att = 1.0 + jnp.tanh(z)                        # (C, T)

    # x*att + y*(2-att)  ==  2*y + (x - y)*att   (one sub + one FMA)
    o_ref[0] = (2.0 * y + (x - y) * att).astype(o_ref.dtype)


def aff_forward(x, ds_y, params, *, tile_hw=8192, vmem_limit_bytes=None):
    """x, ds_y: (N, C, H, W). Returns (N, C, H, W) in the input dtype."""
    assert x.shape == ds_y.shape and x.dtype == ds_y.dtype
    N, C, H, W = x.shape
    HW = H * W
    Ci = params["w1x"].shape[0]

    # Native layout: (N, C, H, W) -> (N, C, H*W) is a free reshape.
    x3 = x.reshape(N, C, HW)
    y3 = ds_y.reshape(N, C, HW)

    t = min(tile_hw, HW)
    assert HW % t == 0, "pad H*W to a multiple of the spatial tile"
    assert t % 128 == 0 or t == HW, "spatial tile should be lane-aligned"
    num_tiles = HW // t

    itemsize = jnp.dtype(x.dtype).itemsize

    if vmem_limit_bytes is None:
        # x, y, out tiles double-buffered + resident folded weights + slack.
        tile_bytes = 3 * 2 * C * t * itemsize
        weight_bytes = (2 * Ci * C + Ci + C * Ci + C) * 4
        vmem_limit_bytes = tile_bytes + 2 * weight_bytes + (4 << 20)
        vmem_limit_bytes = min(max(vmem_limit_bytes, 32 << 20), 64 << 20)

    # Spatial axis first so the 2-TC (v7x) split lands on spatial tiles.
    row_spec = pl.BlockSpec((1, C, t), lambda s, n: (n, 0, s))
    full = lambda shape: pl.BlockSpec(shape, lambda s, n: tuple(0 for _ in shape))

    # Advisory cost estimate: HBM-bound (x, y read; out written).
    flops = 2 * N * HW * (2 * C * Ci + Ci * C) + 8 * N * HW * C
    transcendentals = N * HW * (Ci + C)
    bytes_accessed = 3 * N * C * HW * itemsize

    out3 = pl.pallas_call(
        _aff_kernel,
        out_shape=jax.ShapeDtypeStruct((N, C, HW), x.dtype),
        grid_spec=pltpu.PrefetchScalarGridSpec(
            num_scalar_prefetch=0,
            grid=(num_tiles, N),
            in_specs=[
                row_spec,                 # x
                row_spec,                 # ds_y
                full((Ci, C)),            # w1x (BN1 folded)
                full((Ci, C)),            # w1y (BN1 folded)
                full((Ci, 1)),            # b1  (BN1 folded)
                full((C, Ci)),            # w2  (BN2 folded)
                full((C, 1)),             # b2  (BN2 folded)
            ],
            out_specs=row_spec,
        ),
        compiler_params=pltpu.CompilerParams(
            dimension_semantics=("parallel", "parallel"),
            vmem_limit_bytes=vmem_limit_bytes),
        cost_estimate=pl.CostEstimate(
            flops=flops,
            transcendentals=transcendentals,
            bytes_accessed=bytes_accessed),
    )(x3, y3, params["w1x"], params["w1y"], params["b1"],
      params["w2"], params["b2"])

    return out3.reshape(N, C, H, W)


def make_aff_params(key, channels=64, r=4):
    """Deterministic synthetic parameters, with eval-mode BN folded in."""
    Ci = channels // r
    ks = jax.random.split(key, 10)
    eps = 1e-5

    # Conv1: (Ci, 2C) weight + (Ci,) bias ; Conv2: (C, Ci) weight + (C,) bias
    w1 = jax.random.normal(ks[0], (Ci, 2 * channels), jnp.float32) * 0.1
    b1 = jax.random.normal(ks[1], (Ci,), jnp.float32) * 0.1
    w2 = jax.random.normal(ks[2], (channels, Ci), jnp.float32) * 0.1
    b2 = jax.random.normal(ks[3], (channels,), jnp.float32) * 0.1

    # BatchNorm1 / BatchNorm2 (eval-mode running stats).
    g1 = 1.0 + 0.1 * jax.random.normal(ks[4], (Ci,), jnp.float32)
    be1 = 0.1 * jax.random.normal(ks[5], (Ci,), jnp.float32)
    m1 = 0.1 * jax.random.normal(ks[6], (Ci,), jnp.float32)
    v1 = jnp.abs(jax.random.normal(ks[7], (Ci,), jnp.float32)) + 0.5
    g2 = 1.0 + 0.1 * jax.random.normal(ks[8], (channels,), jnp.float32)
    be2 = 0.1 * jax.random.normal(ks[9], (channels,), jnp.float32)
    m2 = jnp.zeros((channels,), jnp.float32)
    v2 = jnp.ones((channels,), jnp.float32)

    s1 = g1 / jnp.sqrt(v1 + eps)
    s2 = g2 / jnp.sqrt(v2 + eps)

    # Fold BN into conv:  BN(Wx + b) = (s*W) x + (s*b + beta - s*mean)
    w1_f = w1 * s1[:, None]                      # (Ci, 2C)
    b1_f = s1 * b1 + be1 - s1 * m1               # (Ci,)
    w2_f = w2 * s2[:, None]                      # (C, Ci)
    b2_f = s2 * b2 + be2 - s2 * m2               # (C,)

    return {
        # split conv1 weight into x-half / y-half; keep natural (Ci, C)
        # orientation so the kernel computes W @ X directly (no transposes).
        "w1x": jnp.asarray(w1_f[:, :channels]),       # (Ci, C)
        "w1y": jnp.asarray(w1_f[:, channels:]),       # (Ci, C)
        "b1": b1_f.reshape(Ci, 1),
        "w2": jnp.asarray(w2_f),                      # (C, Ci)
        "b2": b2_f.reshape(channels, 1),
    }


def aff_reference(x, ds_y, params):
    """Plain-JAX reference with the same folded parameters, same layout."""
    N, C, H, W = x.shape
    x3 = x.reshape(N, C, -1).astype(jnp.float32)
    y3 = ds_y.reshape(N, C, -1).astype(jnp.float32)
    h = (jnp.einsum("ic,ncs->nis", params["w1x"], x3)
         + jnp.einsum("ic,ncs->nis", params["w1y"], y3)
         + params["b1"][None])
    h = h * jax.nn.sigmoid(h)
    z = jnp.einsum("ci,nis->ncs", params["w2"], h) + params["b2"][None]
    att = 1.0 + jnp.tanh(z)
    out = x3 * att + y3 * (2.0 - att)
    return out.reshape(N, C, H, W)


if __name__ == "__main__":
    channels, r = 16, 4          # inter_channels = 4
    N, H, W = 2, 16, 16          # H*W = 256 -> two 128-lane spatial tiles

    key = jax.random.PRNGKey(0)
    kx, ky, kp = jax.random.split(key, 3)
    x = jax.random.normal(kx, (N, channels, H, W), jnp.float32)
    ds_y = jax.random.normal(ky, (N, channels, H, W), jnp.float32)
    params = make_aff_params(kp, channels=channels, r=r)

    # --- f32, tiled grid (exercises multiple spatial tiles) ------------------
    out = aff_forward(x, ds_y, params, tile_hw=128)
    out = jax.block_until_ready(out)
    ref = jax.block_until_ready(aff_reference(x, ds_y, params))
    assert out.shape == (N, channels, H, W)
    # tolerance covers the MXU's default f32 matmul precision; elementwise math
    # is exact (no approximate reciprocal anymore).
    assert jnp.allclose(out, ref, atol=5e-3, rtol=5e-3), "f32 mismatch vs reference"

    # --- f32, default (single-tile) path --------------------------------------
    out_d = jax.block_until_ready(aff_forward(x, ds_y, params))
    assert jnp.allclose(out_d, ref, atol=5e-3, rtol=5e-3), "default-tile mismatch"

    # --- bf16 I/O (halves HBM traffic; compute stays f32 in-kernel) ----------
    x_bf = x.astype(jnp.bfloat16)
    y_bf = ds_y.astype(jnp.bfloat16)
    out_bf = jax.block_until_ready(aff_forward(x_bf, y_bf, params, tile_hw=128))
    ref_bf = jax.block_until_ready(
        aff_reference(x_bf.astype(jnp.float32), y_bf.astype(jnp.float32), params))
    assert out_bf.dtype == jnp.bfloat16
    assert jnp.allclose(out_bf.astype(jnp.float32), ref_bf, atol=5e-2, rtol=5e-2), \
        "bf16 mismatch vs reference"

    print("KERNEL_OK")
</pallas_src>

<mosaic_0001>
module attributes {stable_mosaic.version = 11 : i64} {
  func.func @_aff_kernel(%arg0: i32, %arg1: i32, %arg2: memref<1x16x128xf32, #tpu.memory_space<vmem>>, %arg3: memref<1x16x128xf32, #tpu.memory_space<vmem>>, %arg4: memref<4x16xf32, #tpu.memory_space<vmem>>, %arg5: memref<4x16xf32, #tpu.memory_space<vmem>>, %arg6: memref<4x1xf32, #tpu.memory_space<vmem>>, %arg7: memref<16x4xf32, #tpu.memory_space<vmem>>, %arg8: memref<16x1xf32, #tpu.memory_space<vmem>>, %arg9: memref<1x16x128xf32, #tpu.memory_space<vmem>>) attributes {dimension_semantics = [#tpu.dimension_semantics<parallel>, #tpu.dimension_semantics<parallel>], iteration_bounds = array<i64: 2, 2>, scalar_prefetch = 0 : i64, scratch_operands = 0 : i64, tpu.core_type = #tpu.core_type<tc>, window_params = [{transform_indices = @transform_0, window_bounds = array<i64: 1, 16, 128>}, {transform_indices = @transform_1, window_bounds = array<i64: 1, 16, 128>}, {pipeline_mode = #tpu.pipeline_mode<synchronous>, transform_indices = @transform_2, window_bounds = array<i64: 4, 16>}, {pipeline_mode = #tpu.pipeline_mode<synchronous>, transform_indices = @transform_3, window_bounds = array<i64: 4, 16>}, {pipeline_mode = #tpu.pipeline_mode<synchronous>, transform_indices = @transform_4, window_bounds = array<i64: 4, 1>}, {pipeline_mode = #tpu.pipeline_mode<synchronous>, transform_indices = @transform_5, window_bounds = array<i64: 16, 4>}, {pipeline_mode = #tpu.pipeline_mode<synchronous>, transform_indices = @transform_6, window_bounds = array<i64: 16, 1>}, {transform_indices = @transform_7, window_bounds = array<i64: 1, 16, 128>}]} {
    %c0 = arith.constant 0 : index
    %c0_0 = arith.constant 0 : index
    %c0_1 = arith.constant 0 : index
    %0 = vector.load %arg2[%c0, %c0_0, %c0_1] : memref<1x16x128xf32, #tpu.memory_space<vmem>>, vector<1x16x128xf32>
    %1 = vector.shape_cast %0 : vector<1x16x128xf32> to vector<16x128xf32>
    %c0_2 = arith.constant 0 : index
    %c0_3 = arith.constant 0 : index
    %c0_4 = arith.constant 0 : index
    %2 = vector.load %arg3[%c0_2, %c0_3, %c0_4] : memref<1x16x128xf32, #tpu.memory_space<vmem>>, vector<1x16x128xf32>
    %3 = vector.shape_cast %2 : vector<1x16x128xf32> to vector<16x128xf32>
    %c0_5 = arith.constant 0 : index
    %c0_6 = arith.constant 0 : index
    %4 = vector.load %arg4[%c0_5, %c0_6] : memref<4x16xf32, #tpu.memory_space<vmem>>, vector<4x16xf32>
    %cst = arith.constant dense<0.000000e+00> : vector<4x128xf32>
    %5 = tpu.matmul %4, %1, %cst {dimension_numbers = #tpu.dot_dimension_numbers<[1], [0], [0], [1], [0, 0, 1, 1], [], []>} : vector<4x16xf32>, vector<16x128xf32>, vector<4x128xf32> -> vector<4x128xf32>
    %c0_7 = arith.constant 0 : index
    %c0_8 = arith.constant 0 : index
    %6 = vector.load %arg5[%c0_7, %c0_8] : memref<4x16xf32, #tpu.memory_space<vmem>>, vector<4x16xf32>
    %cst_9 = arith.constant dense<0.000000e+00> : vector<4x128xf32>
    %7 = tpu.matmul %6, %3, %cst_9 {dimension_numbers = #tpu.dot_dimension_numbers<[1], [0], [0], [1], [0, 0, 1, 1], [], []>} : vector<4x16xf32>, vector<16x128xf32>, vector<4x128xf32> -> vector<4x128xf32>
    %8 = arith.addf %5, %7 : vector<4x128xf32>
    %c0_10 = arith.constant 0 : index
    %c0_11 = arith.constant 0 : index
    %9 = vector.load %arg6[%c0_10, %c0_11] : memref<4x1xf32, #tpu.memory_space<vmem>>, vector<4x1xf32>
    %10 = vector.broadcast %9 : vector<4x1xf32> to vector<4x128xf32>
    %11 = arith.addf %8, %10 : vector<4x128xf32>
    %cst_12 = arith.constant 5.000000e-01 : f32
    %12 = vector.broadcast %cst_12 : f32 to vector<4x128xf32>
    %13 = arith.mulf %12, %11 : vector<4x128xf32>
    %cst_13 = arith.constant 5.000000e-01 : f32
    %14 = vector.broadcast %cst_13 : f32 to vector<4x128xf32>
    %15 = arith.mulf %14, %11 : vector<4x128xf32>
    %16 = math.tanh %15 : vector<4x128xf32>
    %cst_14 = arith.constant 1.000000e+00 : f32
    %17 = vector.broadcast %cst_14 : f32 to vector<4x128xf32>
    %18 = arith.addf %17, %16 : vector<4x128xf32>
    %19 = arith.mulf %13, %18 : vector<4x128xf32>
    %c0_15 = arith.constant 0 : index
    %c0_16 = arith.constant 0 : index
    %20 = vector.load %arg7[%c0_15, %c0_16] : memref<16x4xf32, #tpu.memory_space<vmem>>, vector<16x4xf32>
    %cst_17 = arith.constant dense<0.000000e+00> : vector<16x128xf32>
    %21 = tpu.matmul %20, %19, %cst_17 {dimension_numbers = #tpu.dot_dimension_numbers<[1], [0], [0], [1], [0, 0, 1, 1], [], []>} : vector<16x4xf32>, vector<4x128xf32>, vector<16x128xf32> -> vector<16x128xf32>
    %c0_18 = arith.constant 0 : index
    %c0_19 = arith.constant 0 : index
    %22 = vector.load %arg8[%c0_18, %c0_19] : memref<16x1xf32, #tpu.memory_space<vmem>>, vector<16x1xf32>
    %23 = vector.broadcast %22 : vector<16x1xf32> to vector<16x128xf32>
    %24 = arith.addf %21, %23 : vector<16x128xf32>
    %25 = math.tanh %24 : vector<16x128xf32>
    %cst_20 = arith.constant 1.000000e+00 : f32
    %26 = vector.broadcast %cst_20 : f32 to vector<16x128xf32>
    %27 = arith.addf %26, %25 : vector<16x128xf32>
    %cst_21 = arith.constant 2.000000e+00 : f32
    %28 = vector.broadcast %cst_21 : f32 to vector<16x128xf32>
    %29 = arith.mulf %28, %3 : vector<16x128xf32>
    %30 = arith.subf %1, %3 : vector<16x128xf32>
    %31 = arith.mulf %30, %27 : vector<16x128xf32>
    %32 = arith.addf %29, %31 : vector<16x128xf32>
    %c0_22 = arith.constant 0 : index
    %c0_23 = arith.constant 0 : index
    %c0_24 = arith.constant 0 : index
    %33 = vector.load %arg9[%c0_22, %c0_23, %c0_24] : memref<1x16x128xf32, #tpu.memory_space<vmem>>, vector<1x16x128xf32>
    %34 = vector.shape_cast %33 : vector<1x16x128xf32> to vector<16x128xf32>
    %35 = vector.shape_cast %32 : vector<16x128xf32> to vector<1x16x128xf32>
    tpu.vector_store %arg9[%c0_22, %c0_23, %c0_24], %35 {strides = array<i32>} : memref<1x16x128xf32, #tpu.memory_space<vmem>>, vector<1x16x128xf32>,
    return
  }
  func.func @transform_0(%arg0: i32, %arg1: i32) -> (i32, i32, i32) {
    %c0_i32 = arith.constant 0 : i32
    %c0_i32_0 = arith.constant 0 : i32
    return %arg1, %c0_i32, %arg0 : i32, i32, i32
  }
  func.func @transform_1(%arg0: i32, %arg1: i32) -> (i32, i32, i32) {
    %c0_i32 = arith.constant 0 : i32
    %c0_i32_0 = arith.constant 0 : i32
    return %arg1, %c0_i32, %arg0 : i32, i32, i32
  }
  func.func @transform_2(%arg0: i32, %arg1: i32) -> (i32, i32) {
    %c0_i32 = arith.constant 0 : i32
    %c0_i32_0 = arith.constant 0 : i32
    %c0_i32_1 = arith.constant 0 : i32
    return %c0_i32, %c0_i32_0 : i32, i32
  }
  func.func @transform_3(%arg0: i32, %arg1: i32) -> (i32, i32) {
    %c0_i32 = arith.constant 0 : i32
    %c0_i32_0 = arith.constant 0 : i32
    %c0_i32_1 = arith.constant 0 : i32
    return %c0_i32, %c0_i32_0 : i32, i32
  }
  func.func @transform_4(%arg0: i32, %arg1: i32) -> (i32, i32) {
    %c0_i32 = arith.constant 0 : i32
    %c0_i32_0 = arith.constant 0 : i32
    %c0_i32_1 = arith.constant 0 : i32
    return %c0_i32, %c0_i32_0 : i32, i32
  }
  func.func @transform_5(%arg0: i32, %arg1: i32) -> (i32, i32) {
    %c0_i32 = arith.constant 0 : i32
    %c0_i32_0 = arith.constant 0 : i32
    %c0_i32_1 = arith.constant 0 : i32
    return %c0_i32, %c0_i32_0 : i32, i32
  }
  func.func @transform_6(%arg0: i32, %arg1: i32) -> (i32, i32) {
    %c0_i32 = arith.constant 0 : i32
    %c0_i32_0 = arith.constant 0 : i32
    %c0_i32_1 = arith.constant 0 : i32
    return %c0_i32, %c0_i32_0 : i32, i32
  }
  func.func @transform_7(%arg0: i32, %arg1: i32) -> (i32, i32, i32) {
    %c0_i32 = arith.constant 0 : i32
    %c0_i32_0 = arith.constant 0 : i32
    return %arg1, %c0_i32, %arg0 : i32, i32, i32
  }
}

</mosaic_0001>

<llo_original>
// kernel: tpu_custom_call.1
$region0: #{tpu_custom_call.1}
  #allocation0 [shape = 'u32[]', space=smem, size = 0x4, offset = 0x4, fixed_abs, tag = 'smem constant byte address 0x4 - core index']
  #allocation1 [shape = 'u32[144,128]{1,0:T(1,128)}', space=vmem, size = 0x12000, scoped, tag = 'internal scratch']
  %s0 = inlined_call_operand.hbm [shape: f32[2,16,256], index: 0, kind: input, shape index: {}]
  %s1 = inlined_call_operand.hbm [shape: f32[2,16,256], index: 1, kind: input, shape index: {}]
  %s2 = inlined_call_operand.vmem [shape: f32[4,16], index: 2, kind: input, shape index: {}]
  %s3 = inlined_call_operand.vmem [shape: f32[4,16], index: 3, kind: input, shape index: {}]
  %s4 = inlined_call_operand.vmem [shape: f32[4,1], index: 4, kind: input, shape index: {}]
  %s5 = inlined_call_operand.vmem [shape: f32[16,4], index: 5, kind: input, shape index: {}]
  %s6 = inlined_call_operand.vmem [shape: f32[16,1], index: 6, kind: input, shape index: {}]
  %s7 = inlined_call_operand.hbm [shape: f32[2,16,256], index: 7, kind: output, shape index: {}]
  %s8 = sld [smem:[#allocation0]]
  $region69: #{tpu_custom_call.1} parent=0
    _
  %s10 = ssub.s32 1, %s8
  %s11 = scalar_select 0, %s10, %s8
  $region1: #{tpu_custom_call.1} parent=0
    #allocation2 [shape = 'u8[16384]{0}', space=vmem, size = 0x4000, scoped, tag = 'input window, operand 0']
    #allocation3 [shape = 's32[2]{0}', space=sflag, size = 0x8, scoped, tag = 'scoped memory for tpu_custom_call.1']
    #allocation4 [shape = 's32[2]{0}', space=sflag, size = 0x8, scoped, tag = 'scoped memory for tpu_custom_call.1']
    #allocation5 [shape = 'u8[16384]{0}', space=vmem, size = 0x4000, scoped, tag = 'input window, operand 1']
    #allocation6 [shape = 's32[2]{0}', space=sflag, size = 0x8, scoped, tag = 'scoped memory for tpu_custom_call.1']
    #allocation7 [shape = 'u8[16384]{0}', space=vmem, size = 0x4000, scoped, tag = 'output window, operand 0']
    %12 = vsyncpa [#allocation3], 0
    %s13 = scalar_lea.sflag [#allocation3], 1
    %14 = vsyncpa %s13, 0
    %15 = vsyncpa [#allocation6], 0
    %s16 = scalar_lea.sflag [#allocation6], 1
    %17 = vsyncpa %s16, 0
    %18 = vsyncpa [#allocation4], 0
    %s19 = scalar_lea.sflag [#allocation4], 1
    %20 = vsyncpa %s19, 0
    loop: start=0, step=1, limit=6
    $region2: #{tpu_custom_call.1} parent=1 // loop_pre_header
      _
    $region3: #{tpu_custom_call.1} parent=1 // loop_header
      %s22 = sphi 0, %s26
      %p23 = scmp.ge.s32.totalorder %s22, 6
      %s29 = sphi 0, %s41
      %s30 = sphi 0, %s37
      %s31 = sphi 0, %s29
      %s32 = sphi 0, %s30
      %s33 = sphi 0, %s31
      %s34 = sphi 0, %s32
      %s46 = sphi 0, %s48
      %s49 = sphi 0, %s46
      %s50 = sphi 0, %s49
      %s66 = sphi 0, %s50
      %s74 = sphi 0, %s76
      %s77 = sphi 0, %s74
      %s78 = sphi 0, %s77
      %s94 = sphi 0, %s78
      %s98 = sphi 0, %s98
      %s100 = sphi 0, %s98
      %s101 = sphi 0, %s100
      %s115 = sphi 0, %s101
      %s119 = sphi 0, %s119
      %s121 = sphi 0, %s119
      %s122 = sphi 0, %s121
      %s136 = sphi 0, %s122
      %s140 = sphi 0, %s140
      %s142 = sphi 0, %s140
      %s143 = sphi 0, %s142
      %s157 = sphi 0, %s143
      %s161 = sphi 0, %s161
      %s163 = sphi 0, %s161
      %s164 = sphi 0, %s163
      %s178 = sphi 0, %s164
      %s182 = sphi 0, %s182
      %s184 = sphi 0, %s182
      %s185 = sphi 0, %s184
      %s199 = sphi 0, %s185
      %s207 = sphi 0, %s209
      %s210 = sphi 0, %s207
      %s211 = sphi 0, %s210
      %s227 = sphi 0, %s211
    $region4: #{tpu_custom_call.1} parent=1 // loop_header_branch
      %25 = sbr.rel (%p23) target = $region8
    $region5: #{tpu_custom_call.1} parent=1 // loop_body
      %s27 = ssub.s32 %s22, 1
      %s28 = ssub.s32 %s22, 2
      %s35 = sadd.s32 1, %s30
      %p36 = scmp.ge.s32.totalorder %s35, 2
      %s37 = scalar_select %p36, 0, %s35
      %s38 = sadd.s32 1, %s29
      %s39 = scalar_select %p36, %s38, %s29
      %p40 = scmp.ge.s32.totalorder %s39, 2
      %s41 = scalar_select %p40, 0, %s39
      %s42 = ssub.s32 %s30, %s37
      %s43 = ssub.s32 %s29, %s41
      %s44 = sor.u32 %s42, %s43
      %p45 = scmp.eq.s32.totalorder %s44, 0
      %s47 = sadd.s32 %s46, 1
      %s48 = scalar_select %p45, %s46, %s47
      %p51 = pneg %p45
      %p52 = scmp.eq.s32.totalorder %s22, 3
      %p53 = por %p51, %p52
      %p54 = scmp.ne.s32.totalorder %s46, %s49
      %p55 = scmp.eq.s32.totalorder %s22, 0
      %p56 = por %p54, %p55
      %p57 = scmp.ne.s32.totalorder %s46, %s49
      %p58 = scmp.eq.s32.totalorder %s27, 3
      %p59 = por %p57, %p58
      %p60 = scmp.ne.s32.totalorder %s49, %s50
      %p61 = scmp.eq.s32.totalorder %s27, 0
      %p62 = por %p60, %p61
      %p63 = scmp.ne.s32.totalorder %s49, %s50
      %p64 = scmp.eq.s32.totalorder %s28, 3
      %p65 = por %p63, %p64
      %p67 = scmp.ne.s32.totalorder %s50, %s66
      %p68 = scmp.eq.s32.totalorder %s28, 0
      %p69 = por %p67, %p68
      %s70 = ssub.s32 %s30, %s37
      %s71 = ssub.s32 %s29, %s41
      %s72 = sor.u32 %s70, %s71
      %p73 = scmp.eq.s32.totalorder %s72, 0
      %s75 = sadd.s32 %s74, 1
      %s76 = scalar_select %p73, %s74, %s75
      %p79 = pneg %p73
      %p80 = scmp.eq.s32.totalorder %s22, 3
      %p81 = por %p79, %p80
      %p82 = scmp.ne.s32.totalorder %s74, %s77
      %p83 = scmp.eq.s32.totalorder %s22, 0
      %p84 = por %p82, %p83
      %p85 = scmp.ne.s32.totalorder %s74, %s77
      %p86 = scmp.eq.s32.totalorder %s27, 3
      %p87 = por %p85, %p86
      %p88 = scmp.ne.s32.totalorder %s77, %s78
      %p89 = scmp.eq.s32.totalorder %s27, 0
      %p90 = por %p88, %p89
      %p91 = scmp.ne.s32.totalorder %s77, %s78
      %p92 = scmp.eq.s32.totalorder %s28, 3
      %p93 = por %p91, %p92
      %p95 = scmp.ne.s32.totalorder %s78, %s94
      %p96 = scmp.eq.s32.totalorder %s28, 0
      %p97 = por %p95, %p96
      %s99 = sadd.s32 %s98, 1
      %p102 = scmp.eq.s32.totalorder %s22, 3
      %p103 = scmp.ne.s32.totalorder %s98, %s100
      %p104 = scmp.eq.s32.totalorder %s22, 0
      %p105 = por %p103, %p104
      %p106 = scmp.ne.s32.totalorder %s98, %s100
      %p107 = scmp.eq.s32.totalorder %s27, 3
      %p108 = por %p106, %p107
      %p109 = scmp.ne.s32.totalorder %s100, %s101
      %p110 = scmp.eq.s32.totalorder %s27, 0
      %p111 = por %p109, %p110
      %p112 = scmp.ne.s32.totalorder %s100, %s101
      %p113 = scmp.eq.s32.totalorder %s28, 3
      %p114 = por %p112, %p113
      %p116 = scmp.ne.s32.totalorder %s101, %s115
      %p117 = scmp.eq.s32.totalorder %s28, 0
      %p118 = por %p116, %p117
      %s120 = sadd.s32 %s119, 1
      %p123 = scmp.eq.s32.totalorder %s22, 3
      %p124 = scmp.ne.s32.totalorder %s119, %s121
      %p125 = scmp.eq.s32.totalorder %s22, 0
      %p126 = por %p124, %p125
      %p127 = scmp.ne.s32.totalorder %s119, %s121
      %p128 = scmp.eq.s32.totalorder %s27, 3
      %p129 = por %p127, %p128
      %p130 = scmp.ne.s32.totalorder %s121, %s122
      %p131 = scmp.eq.s32.totalorder %s27, 0
      %p132 = por %p130, %p131
      %p133 = scmp.ne.s32.totalorder %s121, %s122
      %p134 = scmp.eq.s32.totalorder %s28, 3
      %p135 = por %p133, %p134
      %p137 = scmp.ne.s32.totalorder %s122, %s136
      %p138 = scmp.eq.s32.totalorder %s28, 0
      %p139 = por %p137, %p138
      %s141 = sadd.s32 %s140, 1
      %p144 = scmp.eq.s32.totalorder %s22, 3
      %p145 = scmp.ne.s32.totalorder %s140, %s142
      %p146 = scmp.eq.s32.totalorder %s22, 0
      %p147 = por %p145, %p146
      %p148 = scmp.ne.s32.totalorder %s140, %s142
      %p149 = scmp.eq.s32.totalorder %s27, 3
      %p150 = por %p148, %p149
      %p151 = scmp.ne.s32.totalorder %s142, %s143
      %p152 = scmp.eq.s32.totalorder %s27, 0
      %p153 = por %p151, %p152
      %p154 = scmp.ne.s32.totalorder %s142, %s143
      %p155 = scmp.eq.s32.totalorder %s28, 3
      %p156 = por %p154, %p155
      %p158 = scmp.ne.s32.totalorder %s143, %s157
      %p159 = scmp.eq.s32.totalorder %s28, 0
      %p160 = por %p158, %p159
      %s162 = sadd.s32 %s161, 1
      %p165 = scmp.eq.s32.totalorder %s22, 3
      %p166 = scmp.ne.s32.totalorder %s161, %s163
      %p167 = scmp.eq.s32.totalorder %s22, 0
      %p168 = por %p166, %p167
      %p169 = scmp.ne.s32.totalorder %s161, %s163
      %p170 = scmp.eq.s32.totalorder %s27, 3
      %p171 = por %p169, %p170
      %p172 = scmp.ne.s32.totalorder %s163, %s164
      %p173 = scmp.eq.s32.totalorder %s27, 0
      %p174 = por %p172, %p173
      %p175 = scmp.ne.s32.totalorder %s163, %s164
      %p176 = scmp.eq.s32.totalorder %s28, 3
      %p177 = por %p175, %p176
      %p179 = scmp.ne.s32.totalorder %s164, %s178
      %p180 = scmp.eq.s32.totalorder %s28, 0
      %p181 = por %p179, %p180
      %s183 = sadd.s32 %s182, 1
      %p186 = scmp.eq.s32.totalorder %s22, 3
      %p187 = scmp.ne.s32.totalorder %s182, %s184
      %p188 = scmp.eq.s32.totalorder %s22, 0
      %p189 = por %p187, %p188
      %p190 = scmp.ne.s32.totalorder %s182, %s184
      %p191 = scmp.eq.s32.totalorder %s27, 3
      %p192 = por %p190, %p191
      %p193 = scmp.ne.s32.totalorder %s184, %s185
      %p194 = scmp.eq.s32.totalorder %s27, 0
      %p195 = por %p193, %p194
      %p196 = scmp.ne.s32.totalorder %s184, %s185
      %p197 = scmp.eq.s32.totalorder %s28, 3
      %p198 = por %p196, %p197
      %p200 = scmp.ne.s32.totalorder %s185, %s199
      %p201 = scmp.eq.s32.totalorder %s28, 0
      %p202 = por %p200, %p201
      %s203 = ssub.s32 %s30, %s37
      %s204 = ssub.s32 %s29, %s41
      %s205 = sor.u32 %s203, %s204
      %p206 = scmp.eq.s32.totalorder %s205, 0
      %s208 = sadd.s32 %s207, 1
      %s209 = scalar_select %p206, %s207, %s208
      %p212 = pneg %p206
      %p213 = scmp.eq.s32.totalorder %s22, 3
      %p214 = por %p212, %p213
      %p215 = scmp.ne.s32.totalorder %s207, %s210
      %p216 = scmp.eq.s32.totalorder %s22, 0
      %p217 = por %p215, %p216
      %p218 = scmp.ne.s32.totalorder %s207, %s210
      %p219 = scmp.eq.s32.totalorder %s27, 3
      %p220 = por %p218, %p219
      %p221 = scmp.ne.s32.totalorder %s210, %s211
      %p222 = scmp.eq.s32.totalorder %s27, 0
      %p223 = por %p221, %p222
      %p224 = scmp.ne.s32.totalorder %s210, %s211
      %p225 = scmp.eq.s32.totalorder %s28, 3
      %p226 = por %p224, %p225
      %p228 = scmp.ne.s32.totalorder %s211, %s227
      %p229 = scmp.eq.s32.totalorder %s28, 0
      %p230 = por %p228, %p229
      %p231 = scmp.le.s32.totalorder 1, %s22
      %p232 = scmp.lt.s32.totalorder %s22, 5
      %p233 = pnand %p231, %p232
      %p234 = pneg %p233
      // Predicated region
      $region9: #{tpu_custom_call.1} parent=5 // pred_check
        _
      $region10: #{tpu_custom_call.1} parent=5 // pred_check_branch
        %236 = sbr.rel (%p233) target = $region12
      $region11: #{tpu_custom_call.1} parent=5 // pred_region
        %s237 = ssub.s32 %s22, 1
        // Predicated region
        $region13: #{tpu_custom_call.1} parent=11 // pred_check
          %p238 = pneg %p111
        $region14: #{tpu_custom_call.1} parent=11 // pred_check_branch
          %240 = sbr.rel (%p238) target = $region16
        $region15: #{tpu_custom_call.1} parent=11 // pred_region
          _
        $region16: #{tpu_custom_call.1} parent=11 // pred_fallthru
          _
        // Predicated region
        $region17: #{tpu_custom_call.1} parent=11 // pred_check
          %p241 = pneg %p132
        $region18: #{tpu_custom_call.1} parent=11 // pred_check_branch
          %243 = sbr.rel (%p241) target = $region20
        $region19: #{tpu_custom_call.1} parent=11 // pred_region
          _
        $region20: #{tpu_custom_call.1} parent=11 // pred_fallthru
          _
        // Predicated region
        $region21: #{tpu_custom_call.1} parent=11 // pred_check
          %p244 = pneg %p153
        $region22: #{tpu_custom_call.1} parent=11 // pred_check_branch
          %246 = sbr.rel (%p244) target = $region24
        $region23: #{tpu_custom_call.1} parent=11 // pred_region
          _
        $region24: #{tpu_custom_call.1} parent=11 // pred_fallthru
          _
        // Predicated region
        $region25: #{tpu_custom_call.1} parent=11 // pred_check
          %p247 = pneg %p174
        $region26: #{tpu_custom_call.1} parent=11 // pred_check_branch
          %249 = sbr.rel (%p247) target = $region28
        $region27: #{tpu_custom_call.1} parent=11 // pred_region
          _
        $region28: #{tpu_custom_call.1} parent=11 // pred_fallthru
          _
        // Predicated region
        $region29: #{tpu_custom_call.1} parent=11 // pred_check
          %p250 = pneg %p195
        $region30: #{tpu_custom_call.1} parent=11 // pred_check_branch
          %252 = sbr.rel (%p250) target = $region32
        $region31: #{tpu_custom_call.1} parent=11 // pred_region
          _
        $region32: #{tpu_custom_call.1} parent=11 // pred_fallthru
          _
      $region12: #{tpu_custom_call.1} parent=5 // pred_fallthru
        _
      %p253 = scmp.lt.s32.totalorder %s22, 4
      // Predicated region
      $region33: #{tpu_custom_call.1} parent=5 // pred_check
        %p254 = pneg %p253
      $region34: #{tpu_custom_call.1} parent=5 // pred_check_branch
        %256 = sbr.rel (%p254) target = $region36
      $region35: #{tpu_custom_call.1} parent=5 // pred_region
        // Predicated region
        $region37: #{tpu_custom_call.1} parent=35 // pred_check
          %p257 = pneg %p56
        $region38: #{tpu_custom_call.1} parent=35 // pred_check_branch
          %259 = sbr.rel (%p257) target = $region40
        $region39: #{tpu_custom_call.1} parent=35 // pred_region
          %s260 = sand.u32 %s46, 1
          %s261 = scalar_lea.sflag [#allocation3], %s260
          %s262 = sand.u32 %s46, 1
          %s263 = smul.addr %s262, 16
          %s264 = scalar_lea.vmem [#allocation2], %s263
          %s266 = ssub.s32 256, 256
          %267 = vsyncadd %s261, %s266
          %s268 = smul.addr %s30, 4
          %s269 = sadd.s32 %s29, %s268
          %s270 = smul.addr %s269, 128
          %s271 = scalar_lea.hbm %s0, %s270
          %s272 = sshll.u32 %s264, 4
          %s273 = int_to_ptr.vmem [resolvable:$true] %s272
          %278 = dma.hbm_to_vmem [thread:$0]  %s271, 256, %s273, %s261, 256, 128, 8
        $region40: #{tpu_custom_call.1} parent=35 // pred_fallthru
          _
        // Predicated region
        $region41: #{tpu_custom_call.1} parent=35 // pred_check
          %p279 = pneg %p84
        $region42: #{tpu_custom_call.1} parent=35 // pred_check_branch
          %281 = sbr.rel (%p279) target = $region44
        $region43: #{tpu_custom_call.1} parent=35 // pred_region
          %s282 = sand.u32 %s74, 1
          %s283 = scalar_lea.sflag [#allocation6], %s282
          %s284 = sand.u32 %s74, 1
          %s285 = smul.addr %s284, 16
          %s286 = scalar_lea.vmem [#allocation5], %s285
          %s288 = ssub.s32 256, 256
          %289 = vsyncadd %s283, %s288
          %s290 = smul.addr %s30, 4
          %s291 = sadd.s32 %s29, %s290
          %s292 = smul.addr %s291, 128
          %s293 = scalar_lea.hbm %s1, %s292
          %s294 = sshll.u32 %s286, 4
          %s295 = int_to_ptr.vmem [resolvable:$true] %s294
          %300 = dma.hbm_to_vmem [thread:$0]  %s293, 256, %s295, %s283, 256, 128, 8
        $region44: #{tpu_custom_call.1} parent=35 // pred_fallthru
          _
      $region36: #{tpu_custom_call.1} parent=5 // pred_fallthru
        _
      %p301 = scmp.le.s32.totalorder 1, %s22
      %p302 = scmp.lt.s32.totalorder %s22, 5
      %p303 = pnand %p301, %p302
      %p304 = pneg %p303
      // Predicated region
      $region45: #{tpu_custom_call.1} parent=5 // pred_check
        _
      $region46: #{tpu_custom_call.1} parent=5 // pred_check_branch
        %306 = sbr.rel (%p303) target = $region48
      $region47: #{tpu_custom_call.1} parent=5 // pred_region
        %s307 = ssub.s32 %s22, 1
        %s308 = sand.u32 %s49, 1
        %s309 = scalar_lea.sflag [#allocation3], %s308
        %s310 = sand.u32 %s49, 1
        %s311 = smul.addr %s310, 16
        %s312 = scalar_lea.vmem [#allocation2], %s311
        // Predicated region
        $region49: #{tpu_custom_call.1} parent=47 // pred_check
          %p313 = pneg %p62
        $region50: #{tpu_custom_call.1} parent=47 // pred_check_branch
          %315 = sbr.rel (%p313) target = $region52
        $region51: #{tpu_custom_call.1} parent=47 // pred_region
          %316 = dma.done %s309, 256
        $region52: #{tpu_custom_call.1} parent=47 // pred_fallthru
          _
        %s317 = sand.u32 %s77, 1
        %s318 = scalar_lea.sflag [#allocation6], %s317
        %s319 = sand.u32 %s77, 1
        %s320 = smul.addr %s319, 16
        %s321 = scalar_lea.vmem [#allocation5], %s320
        // Predicated region
        $region53: #{tpu_custom_call.1} parent=47 // pred_check
          %p322 = pneg %p90
        $region54: #{tpu_custom_call.1} parent=47 // pred_check_branch
          %324 = sbr.rel (%p322) target = $region56
        $region55: #{tpu_custom_call.1} parent=47 // pred_region
          %325 = dma.done %s318, 256
        $region56: #{tpu_custom_call.1} parent=47 // pred_fallthru
          _
        %s326 = sand.u32 %s49, 1
        %s327 = scalar_lea.sflag [#allocation3], %s326
        %s328 = sand.u32 %s49, 1
        %s329 = smul.addr %s328, 16
        %s330 = scalar_lea.vmem [#allocation2], %s329
        %p331 = pneg %p62
        %p332 = pneg %p59
        %s333 = sand.u32 %s77, 1
        %s334 = scalar_lea.sflag [#allocation6], %s333
        %s335 = sand.u32 %s77, 1
        %s336 = smul.addr %s335, 16
        %s337 = scalar_lea.vmem [#allocation5], %s336
        %p338 = pneg %p90
        %p339 = pneg %p87
        %p340 = pneg %p111
        %p341 = pneg %p108
        %p342 = pneg %p132
        %p343 = pneg %p129
        %p344 = pneg %p153
        %p345 = pneg %p150
        %p346 = pneg %p174
        %p347 = pneg %p171
        %p348 = pneg %p195
        %p349 = pneg %p192
        %p350 = pneg %p223
        %p351 = pneg %p220
        %s352 = sand.u32 %s210, 1
        %s353 = scalar_lea.sflag [#allocation4], %s352
        %s354 = sand.u32 %s210, 1
        %s355 = smul.addr %s354, 16
        %s356 = scalar_lea.vmem [#allocation7], %s355
        %v357 = vld [vmem:[%s312] sm:$0xff]
        %v358 = vld [vmem:[%s312 + $0x8] sm:$0xff]
        %v359 = vld [vmem:[%s321] sm:$0xff]
        %v360 = vld [vmem:[%s321 + $0x8] sm:$0xff]
        %v361 = vld [vmem:[%s2] sm:$0xf]
        %v362 = vld [vmem:[%s3] sm:$0xf]
        %vm363 = vcmask 130048
        %v365 = vsel %vm363, %v362, 0
        %367 = vmatprep.subr.mxu0 0.0
        %368 = vmatpush1.msra.mxu0 0.0
        %369 = vmatprep.subr.mxu0 0.0
        %370 = vmatpush1.msra.mxu0 0.0
        %371 = vmatprep.subr.mxu0 0.0
        %372 = vmatpush1.msra.mxu0 0.0
        %373 = vmatprep.subr.mxu0 0.0
        %374 = vmatpush1.msra.mxu0 0.0
        %375 = vmatprep.subr.mxu0 0.0
        %376 = vmatpush1.msra.mxu0 0.0
        %377 = vmatprep.subr.mxu0 0.0
        %378 = vmatpush1.msra.mxu0 0.0
        %379 = vmatprep.subr.mxu0 0.0
        %380 = vmatpush1.msra.mxu0 0.0
        %381 = vmatprep.subr.mxu0 0.0
        %382 = vmatpush1.msra.mxu0 0.0
        %383 = vmatprep.subr.mxu0 0.0
        %384 = vmatpush1.msra.mxu0 0.0
        %385 = vmatprep.subr.mxu0 0.0
        %386 = vmatpush1.msra.mxu0 0.0
        %387 = vmatprep.subr.mxu0 0.0
        %388 = vmatpush1.msra.mxu0 0.0
        %389 = vmatprep.subr.mxu0 0.0
        %390 = vmatpush1.msra.mxu0 0.0
        %391 = vmatprep.subr.mxu0 0.0
        %392 = vmatpush1.msra.mxu0 0.0
        %393 = vmatprep.subr.mxu0 0.0
        %394 = vmatpush1.msra.mxu0 0.0
        %395 = vmatprep.subr.mxu0 0.0
        %396 = vmatpush1.msra.mxu0 %v360
        %397 = vmatprep.subr.mxu0 0.0
        %398 = vmatpush1.msra.mxu0 %v359
        %399 = vmatprep.subr.mxu0 0.0
        %400 = vmatpush2.msra.mxu0 0.0
        %401 = vmatprep.subr.mxu0 0.0
        %402 = vmatpush2.msra.mxu0 0.0
        %403 = vmatprep.subr.mxu0 0.0
        %404 = vmatpush2.msra.mxu0 0.0
        %405 = vmatprep.subr.mxu0 0.0
        %406 = vmatpush2.msra.mxu0 0.0
        %407 = vmatprep.subr.mxu0 0.0
        %408 = vmatpush2.msra.mxu0 0.0
        %409 = vmatprep.subr.mxu0 0.0
        %410 = vmatpush2.msra.mxu0 0.0
        %411 = vmatprep.subr.mxu0 0.0
        %412 = vmatpush2.msra.mxu0 0.0
        %413 = vmatprep.subr.mxu0 0.0
        %414 = vmatpush2.msra.mxu0 0.0
        %415 = vmatprep.subr.mxu0 0.0
        %416 = vmatpush2.msra.mxu0 0.0
        %417 = vmatprep.subr.mxu0 0.0
        %418 = vmatpush2.msra.mxu0 0.0
        %419 = vmatprep.subr.mxu0 0.0
        %420 = vmatpush2.msra.mxu0 0.0
        %421 = vmatprep.subr.mxu0 0.0
        %422 = vmatpush2.msra.mxu0 0.0
        %423 = vmatprep.subr.mxu0 0.0
        %424 = vmatpush2.msra.mxu0 0.0
        %425 = vmatprep.subr.mxu0 0.0
        %426 = vmatpush2.msra.mxu0 0.0
        %427 = vmatprep.subr.mxu0 0.0
        %428 = vmatpush2.msra.mxu0 0.0
        %429 = vmatprep.subr.mxu0 0.0
        %430 = vmatpush2.msra.mxu0 0.0
        %431 = vmatprep.mubr.f32.mxu0 0.0
        %432 = vmatmul.mubr.f32.gmra.mxu0 %v365
        %v433 = vpop.f32.mrf.mxu0
        %v434 = vadd.f32 0.0, %v433
        %v435 = vpop.f32.mrf.mxu0
        %436 = vdwg.mxu0
        %v438 = vsel %vm363, %v361, 0
        %440 = vmatprep.subr.mxu0 0.0
        %441 = vmatpush1.msra.mxu0 0.0
        %442 = vmatprep.subr.mxu0 0.0
        %443 = vmatpush1.msra.mxu0 0.0
        %444 = vmatprep.subr.mxu0 0.0
        %445 = vmatpush1.msra.mxu0 0.0
        %446 = vmatprep.subr.mxu0 0.0
        %447 = vmatpush1.msra.mxu0 0.0
        %448 = vmatprep.subr.mxu0 0.0
        %449 = vmatpush1.msra.mxu0 0.0
        %450 = vmatprep.subr.mxu0 0.0
        %451 = vmatpush1.msra.mxu0 0.0
        %452 = vmatprep.subr.mxu0 0.0
        %453 = vmatpush1.msra.mxu0 0.0
        %454 = vmatprep.subr.mxu0 0.0
        %455 = vmatpush1.msra.mxu0 0.0
        %456 = vmatprep.subr.mxu0 0.0
        %457 = vmatpush1.msra.mxu0 0.0
        %458 = vmatprep.subr.mxu0 0.0
        %459 = vmatpush1.msra.mxu0 0.0
        %460 = vmatprep.subr.mxu0 0.0
        %461 = vmatpush1.msra.mxu0 0.0
        %462 = vmatprep.subr.mxu0 0.0
        %463 = vmatpush1.msra.mxu0 0.0
        %464 = vmatprep.subr.mxu0 0.0
        %465 = vmatpush1.msra.mxu0 0.0
        %466 = vmatprep.subr.mxu0 0.0
        %467 = vmatpush1.msra.mxu0 0.0
        %468 = vmatprep.subr.mxu0 0.0
        %469 = vmatpush1.msra.mxu0 %v358
        %470 = vmatprep.subr.mxu0 0.0
        %471 = vmatpush1.msra.mxu0 %v357
        %472 = vmatprep.subr.mxu0 0.0
        %473 = vmatpush2.msra.mxu0 0.0
        %474 = vmatprep.subr.mxu0 0.0
        %475 = vmatpush2.msra.mxu0 0.0
        %476 = vmatprep.subr.mxu0 0.0
        %477 = vmatpush2.msra.mxu0 0.0
        %478 = vmatprep.subr.mxu0 0.0
        %479 = vmatpush2.msra.mxu0 0.0
        %480 = vmatprep.subr.mxu0 0.0
        %481 = vmatpush2.msra.mxu0 0.0
        %482 = vmatprep.subr.mxu0 0.0
        %483 = vmatpush2.msra.mxu0 0.0
        %484 = vmatprep.subr.mxu0 0.0
        %485 = vmatpush2.msra.mxu0 0.0
        %486 = vmatprep.subr.mxu0 0.0
        %487 = vmatpush2.msra.mxu0 0.0
        %488 = vmatprep.subr.mxu0 0.0
        %489 = vmatpush2.msra.mxu0 0.0
        %490 = vmatprep.subr.mxu0 0.0
        %491 = vmatpush2.msra.mxu0 0.0
        %492 = vmatprep.subr.mxu0 0.0
        %493 = vmatpush2.msra.mxu0 0.0
        %494 = vmatprep.subr.mxu0 0.0
        %495 = vmatpush2.msra.mxu0 0.0
        %496 = vmatprep.subr.mxu0 0.0
        %497 = vmatpush2.msra.mxu0 0.0
        %498 = vmatprep.subr.mxu0 0.0
        %499 = vmatpush2.msra.mxu0 0.0
        %500 = vmatprep.subr.mxu0 0.0
        %501 = vmatpush2.msra.mxu0 0.0
        %502 = vmatprep.subr.mxu0 0.0
        %503 = vmatpush2.msra.mxu0 0.0
        %504 = vmatprep.mubr.f32.mxu0 0.0
        %505 = vmatmul.mubr.f32.gmra.mxu0 %v438
        %v506 = vpop.f32.mrf.mxu0
        %v507 = vadd.f32 %v434, %v506
        %v508 = vpop.f32.mrf.mxu0
        %509 = vdwg.mxu0
        %v510 = vld [vmem:[%s4] sm:$0xf]
        %512 = vset.pattern.permute.xlu0 0
        %513 = vperm.xlu0 %512, %v510
        %v514 = vpop.permute.xlu0 %513
        %v516 = vadd.f32 %v507, %v514
        %v517 = vmul.f32 %v516, 0.5
        %v518 = vtanh.pop %v517
        %v519 = vadd.f32 %v518, 1.0
        %v520 = vmul.f32 %v517, %v519
        %v521 = vld [vmem:[%s5] sm:$0xff]
        %v522 = vld [vmem:[%s5 + $0x8] sm:$0xff]
        %v523 = vld [vmem:[%s6] sm:$0xff]
        %v524 = vld [vmem:[%s6 + $0x8] sm:$0xff]
        %526 = vset.pattern.permute.xlu0 0
        %527 = vperm.xlu0 %526, %v523
        %v528 = vpop.permute.xlu0 %527
        %531 = vset.pattern.permute.xlu0 0
        %532 = vperm.xlu0 %531, %v524
        %v533 = vpop.permute.xlu0 %532
        %vm535 = vcmask 31744
        %v537 = vsel %vm535, %v521, 0
        %v540 = vsel %vm535, %v522, 0
        %vm542 = vcmask 1043456
        %v544 = vsel %vm542, %v520, 0
        %546 = vmatprep.subr.mxu0 0.0
        %547 = vmatpush1.msra.mxu0 0.0
        %548 = vmatprep.subr.mxu0 0.0
        %549 = vmatpush1.msra.mxu0 0.0
        %550 = vmatprep.subr.mxu0 0.0
        %551 = vmatpush1.msra.mxu0 0.0
        %552 = vmatprep.subr.mxu0 0.0
        %553 = vmatpush1.msra.mxu0 0.0
        %554 = vmatprep.subr.mxu0 0.0
        %555 = vmatpush1.msra.mxu0 0.0
        %556 = vmatprep.subr.mxu0 0.0
        %557 = vmatpush1.msra.mxu0 0.0
        %558 = vmatprep.subr.mxu0 0.0
        %559 = vmatpush1.msra.mxu0 0.0
        %560 = vmatprep.subr.mxu0 0.0
        %561 = vmatpush1.msra.mxu0 0.0
        %562 = vmatprep.subr.mxu0 0.0
        %563 = vmatpush1.msra.mxu0 0.0
        %564 = vmatprep.subr.mxu0 0.0
        %565 = vmatpush1.msra.mxu0 0.0
        %566 = vmatprep.subr.mxu0 0.0
        %567 = vmatpush1.msra.mxu0 0.0
        %568 = vmatprep.subr.mxu0 0.0
        %569 = vmatpush1.msra.mxu0 0.0
        %570 = vmatprep.subr.mxu0 0.0
        %571 = vmatpush1.msra.mxu0 0.0
        %572 = vmatprep.subr.mxu0 0.0
        %573 = vmatpush1.msra.mxu0 0.0
        %574 = vmatprep.subr.mxu0 0.0
        %575 = vmatpush1.msra.mxu0 0.0
        %576 = vmatprep.subr.mxu0 0.0
        %577 = vmatpush1.msra.mxu0 %v544
        %578 = vmatprep.subr.mxu0 0.0
        %579 = vmatpush2.msra.mxu0 0.0
        %580 = vmatprep.subr.mxu0 0.0
        %581 = vmatpush2.msra.mxu0 0.0
        %582 = vmatprep.subr.mxu0 0.0
        %583 = vmatpush2.msra.mxu0 0.0
        %584 = vmatprep.subr.mxu0 0.0
        %585 = vmatpush2.msra.mxu0 0.0
        %586 = vmatprep.subr.mxu0 0.0
        %587 = vmatpush2.msra.mxu0 0.0
        %588 = vmatprep.subr.mxu0 0.0
        %589 = vmatpush2.msra.mxu0 0.0
        %590 = vmatprep.subr.mxu0 0.0
        %591 = vmatpush2.msra.mxu0 0.0
        %592 = vmatprep.subr.mxu0 0.0
        %593 = vmatpush2.msra.mxu0 0.0
        %594 = vmatprep.subr.mxu0 0.0
        %595 = vmatpush2.msra.mxu0 0.0
        %596 = vmatprep.subr.mxu0 0.0
        %597 = vmatpush2.msra.mxu0 0.0
        %598 = vmatprep.subr.mxu0 0.0
        %599 = vmatpush2.msra.mxu0 0.0
        %600 = vmatprep.subr.mxu0 0.0
        %601 = vmatpush2.msra.mxu0 0.0
        %602 = vmatprep.subr.mxu0 0.0
        %603 = vmatpush2.msra.mxu0 0.0
        %604 = vmatprep.subr.mxu0 0.0
        %605 = vmatpush2.msra.mxu0 0.0
        %606 = vmatprep.subr.mxu0 0.0
        %607 = vmatpush2.msra.mxu0 0.0
        %608 = vmatprep.subr.mxu0 0.0
        %609 = vmatpush2.msra.mxu0 0.0
        %610 = vmatprep.mubr.f32.mxu0 0.0
        %611 = vmatmul.mubr.f32.gmra.mxu0 %v537
        %v612 = vpop.f32.mrf.mxu0
        %v613 = vadd.f32 %v528, %v612
        %v614 = vpop.f32.mrf.mxu0
        %615 = vmatprep.mubr.f32.mxu0 0.0
        %616 = vmatmul.mubr.f32.gmra.mxu0 %v540
        %v617 = vpop.f32.mrf.mxu0
        %v618 = vadd.f32 %v533, %v617
        %v619 = vpop.f32.mrf.mxu0
        %620 = vdwg.mxu0
        %v621 = vtanh.pop %v613
        %v622 = vtanh.pop %v618
        %v623 = vadd.f32 %v621, 1.0
        %v624 = vadd.f32 %v622, 1.0
        %v625 = vmul.f32 %v359, 2.0
        %v626 = vmul.f32 %v360, 2.0
        %v627 = vsub.f32 %v357, %v359
        %v628 = vsub.f32 %v358, %v360
        %v629 = vmul.f32 %v627, %v623
        %v630 = vmul.f32 %v628, %v624
        %v631 = vadd.f32 %v625, %v629
        %v632 = vadd.f32 %v626, %v630
        %633 = vst [vmem:[%s356] sm:$0xff] %v631
        %634 = vst [vmem:[%s356 + $0x8] sm:$0xff] %v632
        %s635 = sand.u32 %s210, 1
        %s636 = scalar_lea.sflag [#allocation4], %s635
        %s637 = sand.u32 %s210, 1
        %s638 = smul.addr %s637, 16
        %s639 = scalar_lea.vmem [#allocation7], %s638
        // Predicated region
        $region57: #{tpu_custom_call.1} parent=47 // pred_check
          %p640 = pneg %p220
        $region58: #{tpu_custom_call.1} parent=47 // pred_check_branch
          %642 = sbr.rel (%p640) target = $region60
        $region59: #{tpu_custom_call.1} parent=47 // pred_region
          %s644 = ssub.s32 256, 256
          %645 = vsyncadd %s636, %s644
          %s646 = smul.addr %s32, 4
          %s647 = sadd.s32 %s31, %s646
          %s648 = smul.addr %s647, 128
          %s649 = scalar_lea.hbm %s7, %s648
          %s650 = sshll.u32 %s639, 4
          %s651 = int_to_ptr.vmem [resolvable:$true] %s650
          %656 = dma.vmem_to_hbm [thread:$0]  %s651, 256, %s649, %s636, 128, 256, 8
        $region60: #{tpu_custom_call.1} parent=47 // pred_fallthru
          _
      $region48: #{tpu_custom_call.1} parent=5 // pred_fallthru
        _
      %p657 = scmp.le.s32.totalorder 2, %s22
      // Predicated region
      $region61: #{tpu_custom_call.1} parent=5 // pred_check
        %p658 = pneg %p657
      $region62: #{tpu_custom_call.1} parent=5 // pred_check_branch
        %660 = sbr.rel (%p658) target = $region64
      $region63: #{tpu_custom_call.1} parent=5 // pred_region
        %s661 = ssub.s32 %s22, 2
        // Predicated region
        $region65: #{tpu_custom_call.1} parent=63 // pred_check
          %p662 = pneg %p226
        $region66: #{tpu_custom_call.1} parent=63 // pred_check_branch
          %664 = sbr.rel (%p662) target = $region68
        $region67: #{tpu_custom_call.1} parent=63 // pred_region
          %s665 = sand.u32 %s211, 1
          %s666 = scalar_lea.sflag [#allocation4], %s665
          %s667 = sand.u32 %s211, 1
          %s668 = smul.addr %s667, 16
          %s669 = scalar_lea.vmem [#allocation7], %s668
          %670 = dma.done %s666, 256
        $region68: #{tpu_custom_call.1} parent=63 // pred_fallthru
          _
      $region64: #{tpu_custom_call.1} parent=5 // pred_fallthru
        _
    $region6: #{tpu_custom_call.1} parent=1 // loop_footer
      %s26 = sadd.s32 1, %s22
    $region7: #{tpu_custom_call.1} parent=1 // loop_footer_branch
      %21 = sbr.rel target = $region3
    $region8: #{tpu_custom_call.1} parent=1 // loop_exit
      _
    %671 = vsyncpa [#allocation3], 1
    %s672 = scalar_lea.sflag [#allocation3], 1
    %673 = vsyncpa %s672, 1
    %674 = vsyncpa [#allocation6], 1
    %s675 = scalar_lea.sflag [#allocation6], 1
    %676 = vsyncpa %s675, 1
    %677 = vsyncpa [#allocation4], 1
    %s678 = scalar_lea.sflag [#allocation4], 1
    %679 = vsyncpa %s678, 1

</llo_original>
